<compile_context>
chip_gen: v5e
topology: v5e:2x2
jax: 0.10.0
libtpu: 0.0.40
codegen_flags: <defaults>
</compile_context>

<pallas_src>
import numpy as np
import jax
import jax.numpy as jnp
from jax.experimental import pallas as pl
from jax.experimental.pallas import tpu as pltpu

_LANE = 128      # last-dim tile (lane width)
_SUBLANE = 8     # second-to-last-dim tile


def _round_up(x, m):
    return ((x + m - 1) // m) * m


def _cdiv(a, b):
    return (a + b - 1) // b


def _vmem_capacity_bytes():
    """Per-core VMEM capacity; conservative (v7x) fallback if the query fails."""
    try:
        return int(pltpu.get_tpu_info().vmem_capacity_bytes)
    except Exception:
        return 64 << 20


def _decoder_cov_kernel(z_ref, w1_ref, b1_ref, w2_ref, b2_ref, w3_ref, b3_ref, o_ref):
    """3-layer MLP (Linear->ReLU->Linear->ReLU->Linear) on one (TB, Lp) batch tile.

    Weights are bf16 (MXU-native) and VMEM-resident; accumulation, bias-add and
    ReLU are f32.
    """
    x = z_ref[...].astype(jnp.bfloat16)

    h = jnp.dot(x, w1_ref[...], preferred_element_type=jnp.float32) + b1_ref[...]
    h = jnp.maximum(h, 0.0)

    h = jnp.dot(h.astype(jnp.bfloat16), w2_ref[...],
                preferred_element_type=jnp.float32) + b2_ref[...]
    h = jnp.maximum(h, 0.0)

    out = jnp.dot(h.astype(jnp.bfloat16), w3_ref[...],
                  preferred_element_type=jnp.float32) + b3_ref[...]
    o_ref[...] = out.astype(o_ref.dtype)


def prepare_params(params):
    """Pad feature dims to lane multiples and cast weights to bf16 ONCE.

    Done outside the forward so per-call HBM pad/copy traffic disappears.
    Weights stored as (in_features, out_features); biases kept in f32.
    """
    L, H = params["w1"].shape
    Lp, Hp = _round_up(L, _LANE), _round_up(H, _LANE)
    bf16, f32 = jnp.bfloat16, jnp.float32

    w1 = jnp.zeros((Lp, Hp), bf16).at[:L, :H].set(params["w1"].astype(bf16))
    b1 = jnp.zeros((1, Hp), f32).at[:, :H].set(params["b1"].astype(f32).reshape(1, H))
    w2 = jnp.zeros((Hp, Hp), bf16).at[:H, :H].set(params["w2"].astype(bf16))
    b2 = jnp.zeros((1, Hp), f32).at[:, :H].set(params["b2"].astype(f32).reshape(1, H))
    w3 = jnp.zeros((Hp, Lp), bf16).at[:H, :L].set(params["w3"].astype(bf16))
    b3 = jnp.zeros((1, Lp), f32).at[:, :L].set(params["b3"].astype(f32).reshape(1, L))

    return {"L": L, "H": H, "Lp": Lp, "Hp": Hp,
            "w1": w1, "b1": b1, "w2": w2, "b2": b2, "w3": w3, "b3": b3}


def decoder_covariance_forward(z, prepared, *, batch_tile=None):
    """Forward pass of DecoderCovariance.

    Args:
      z: (B, L, 1) | (L, 1) | (1,) float32   (z_dimension == 1, as asserted in torch)
      prepared: output of prepare_params() (padded, bf16-cast weights).
      batch_tile: max rows per grid step; default is VMEM-capacity aware
                  (512 on 128 MiB chips, 256 on v7x).
    Returns:
      logvar_x with the same leading layout as z (last dim = x_dimension = 1).
    """
    # --- ShapeManager.shape_in equivalent -------------------------------------
    ndim = z.ndim
    if ndim == 1:
        # (D,) -> (1, 1, D); like torch, only valid when D == z_dimension == 1
        # and sequence_length == 1.
        z3 = z.reshape(1, 1, z.shape[0])
    elif ndim == 2:
        z3 = z.reshape(1, z.shape[0], z.shape[1])
    elif ndim == 3:
        z3 = z
    else:
        raise ValueError("input tensor must have 1, 2, or 3 dimensions")
    B, L, zd = z3.shape
    assert zd == 1, "z_dimension must be 1"

    Lm, H, Lp, Hp = prepared["L"], prepared["H"], prepared["Lp"], prepared["Hp"]
    assert Lm == L * zd, "sequence_length mismatch with MLP input dim"

    z_flat = z3.reshape(B, L).astype(jnp.float32)   # matches z.view(B, -1) in torch

    # --- tiling: >=2 balanced batch tiles when possible (feeds both v7x TCs) ---
    vmem_cap = _vmem_capacity_bytes()
    if batch_tile is None:
        batch_tile = 512 if vmem_cap >= (100 << 20) else 256

    target_tiles = max(2, _cdiv(B, batch_tile))
    TB = max(_SUBLANE, _round_up(_cdiv(B, target_tiles), _SUBLANE))
    TB = min(TB, _round_up(batch_tile, _SUBLANE))
    Bp = _round_up(B, TB)
    n_tiles = Bp // TB

    # Pad activations only when actually needed.
    if (Bp, Lp) != (B, L):
        z_p = jnp.pad(z_flat, ((0, Bp - B), (0, Lp - L)))
    else:
        z_p = z_flat

    # --- specs: batch-tiled activations, single-buffered resident weights ------
    act_in_buf = 3 if (n_tiles >= 3 and TB * Lp * 4 <= (1 << 20)) else 2
    act_in_spec = pl.BlockSpec((TB, Lp), lambda i: (i, 0),
                               pipeline_mode=pl.Buffered(act_in_buf))
    act_out_spec = pl.BlockSpec((TB, Lp), lambda i: (i, 0))
    resident = lambda shape: pl.BlockSpec(shape, lambda i: (0, 0),
                                          pipeline_mode=pl.Buffered(1))

    # --- VMEM budget (accurate) + cost estimate --------------------------------
    weight_bytes = 2 * (Lp * Hp + Hp * Hp + Hp * Lp) + 4 * (2 * Hp + Lp)  # bf16 W, f32 b, x1
    act_bytes = (act_in_buf + 2) * TB * Lp * 4                            # in + out pipeline bufs
    scratch_bytes = 2 * TB * Hp * 4                                       # f32 hidden temporaries
    vmem_need = weight_bytes + act_bytes + scratch_bytes
    vmem_limit = int(min(max(int(vmem_need * 1.25), 16 << 20), int(0.85 * vmem_cap)))

    flops = 2 * Bp * (Lp * Hp + Hp * Hp + Hp * Lp)
    bytes_accessed = 4 * 2 * Bp * Lp + weight_bytes
    cost = pl.CostEstimate(flops=flops, transcendentals=0, bytes_accessed=bytes_accessed)

    out_p = pl.pallas_call(
        _decoder_cov_kernel,
        out_shape=jax.ShapeDtypeStruct((Bp, Lp), jnp.float32),
        grid=(n_tiles,),
        in_specs=[
            act_in_spec,
            resident((Lp, Hp)), resident((1, Hp)),
            resident((Hp, Hp)), resident((1, Hp)),
            resident((Hp, Lp)), resident((1, Lp)),
        ],
        out_specs=act_out_spec,
        compiler_params=pltpu.CompilerParams(
            dimension_semantics=("parallel",),
            vmem_limit_bytes=vmem_limit,
        ),
        cost_estimate=cost,
    )(z_p, prepared["w1"], prepared["b1"], prepared["w2"], prepared["b2"],
      prepared["w3"], prepared["b3"])

    out = out_p[:B, :L]   # strip batch/feature padding

    # --- ShapeManager.shape_out equivalent --------------------------------------
    if ndim == 3:
        return out.reshape(B, L, 1)
    elif ndim == 2:
        return out.reshape(L, 1)
    else:
        return out.reshape(-1)


def init_params(key, sequence_length, inter_dim):
    """Deterministic init mimicking torch.nn.Linear (uniform(-1/sqrt(fan_in), ...))."""
    L, H = sequence_length, inter_dim
    ks = jax.random.split(key, 6)

    def lin(kw, kb, fan_in, fan_out):
        bound = 1.0 / np.sqrt(fan_in)
        w = jax.random.uniform(kw, (fan_in, fan_out), jnp.float32, -bound, bound)
        b = jax.random.uniform(kb, (1, fan_out), jnp.float32, -bound, bound)
        return w, b

    w1, b1 = lin(ks[0], ks[1], L, H)
    w2, b2 = lin(ks[2], ks[3], H, H)
    w3, b3 = lin(ks[4], ks[5], H, L)
    return {"w1": w1, "b1": b1, "w2": w2, "b2": b2, "w3": w3, "b3": b3}


def _reference_forward(z, params):
    """Pure-JAX f32 reference for correctness check (3-D input)."""
    B, L, _ = z.shape
    x = z.reshape(B, L)
    h = jnp.maximum(x @ params["w1"] + params["b1"], 0.0)
    h = jnp.maximum(h @ params["w2"] + params["b2"], 0.0)
    out = h @ params["w3"] + params["b3"]
    return out.reshape(B, L, 1)


if __name__ == "__main__":
    # Small shapes consistent with the module: batch=2, sequence_length=8,
    # z_dimension=1, inter_dim=32, n_layers=3.
    B, L, H = 2, 8, 32

    key = jax.random.PRNGKey(0)
    k_params, k_z = jax.random.split(key)
    params = init_params(k_params, sequence_length=L, inter_dim=H)
    prepared = prepare_params(params)   # pad + bf16-cast ONCE, outside the forward
    z = jax.random.normal(k_z, (B, L, 1), dtype=jnp.float32)

    logvar_x = jax.block_until_ready(decoder_covariance_forward(z, prepared))
    ref = _reference_forward(z, params)
    assert logvar_x.shape == (B, L, 1)
    # bf16 MXU operands with f32 accumulation -> ~1e-2 relative error is expected.
    np.testing.assert_allclose(np.asarray(logvar_x), np.asarray(ref),
                               rtol=2e-2, atol=2e-2)

    # Also exercise the (L, 1)-shaped path (ShapeManager semantics).
    out2 = jax.block_until_ready(decoder_covariance_forward(z[0], prepared))
    assert out2.shape == (L, 1)
    np.testing.assert_allclose(np.asarray(out2), np.asarray(ref[0]),
                               rtol=2e-2, atol=2e-2)

    print("KERNEL_OK")
</pallas_src>

<mosaic_0001>
module attributes {stable_mosaic.version = 11 : i64} {
  func.func @_decoder_cov_kernel(%arg0: i32, %arg1: memref<8x128xf32, #tpu.memory_space<vmem>>, %arg2: memref<128x128xbf16, #tpu.memory_space<vmem>>, %arg3: memref<1x128xf32, #tpu.memory_space<vmem>>, %arg4: memref<128x128xbf16, #tpu.memory_space<vmem>>, %arg5: memref<1x128xf32, #tpu.memory_space<vmem>>, %arg6: memref<128x128xbf16, #tpu.memory_space<vmem>>, %arg7: memref<1x128xf32, #tpu.memory_space<vmem>>, %arg8: memref<8x128xf32, #tpu.memory_space<vmem>>) attributes {dimension_semantics = [#tpu.dimension_semantics<parallel>], iteration_bounds = array<i64: 1>, scalar_prefetch = 0 : i64, scratch_operands = 0 : i64, tpu.core_type = #tpu.core_type<tc>, window_params = [{pipeline_mode = #tpu.pipeline_mode<double_buffered>, transform_indices = @transform_0, window_bounds = array<i64: 8, 128>}, {pipeline_mode = #tpu.pipeline_mode<synchronous>, transform_indices = @transform_1, window_bounds = array<i64: 128, 128>}, {pipeline_mode = #tpu.pipeline_mode<synchronous>, transform_indices = @transform_2, window_bounds = array<i64: 1, 128>}, {pipeline_mode = #tpu.pipeline_mode<synchronous>, transform_indices = @transform_3, window_bounds = array<i64: 128, 128>}, {pipeline_mode = #tpu.pipeline_mode<synchronous>, transform_indices = @transform_4, window_bounds = array<i64: 1, 128>}, {pipeline_mode = #tpu.pipeline_mode<synchronous>, transform_indices = @transform_5, window_bounds = array<i64: 128, 128>}, {pipeline_mode = #tpu.pipeline_mode<synchronous>, transform_indices = @transform_6, window_bounds = array<i64: 1, 128>}, {transform_indices = @transform_7, window_bounds = array<i64: 8, 128>}]} {
    %c0 = arith.constant 0 : index
    %c0_0 = arith.constant 0 : index
    %0 = vector.load %arg1[%c0, %c0_0] : memref<8x128xf32, #tpu.memory_space<vmem>>, vector<8x128xf32>
    %1 = arith.truncf %0 : vector<8x128xf32> to vector<8x128xbf16>
    %c0_1 = arith.constant 0 : index
    %c0_2 = arith.constant 0 : index
    %2 = vector.load %arg2[%c0_1, %c0_2] : memref<128x128xbf16, #tpu.memory_space<vmem>>, vector<128x128xbf16>
    %cst = arith.constant dense<0.000000e+00> : vector<8x128xf32>
    %3 = tpu.matmul %1, %2, %cst {dimension_numbers = #tpu.dot_dimension_numbers<[1], [0], [0], [1], [0, 0, 1, 1], [], []>} : vector<8x128xbf16>, vector<128x128xbf16>, vector<8x128xf32> -> vector<8x128xf32>
    %c0_3 = arith.constant 0 : index
    %c0_4 = arith.constant 0 : index
    %4 = vector.load %arg3[%c0_3, %c0_4] : memref<1x128xf32, #tpu.memory_space<vmem>>, vector<1x128xf32>
    %5 = vector.broadcast %4 : vector<1x128xf32> to vector<8x128xf32>
    %6 = arith.addf %3, %5 : vector<8x128xf32>
    %cst_5 = arith.constant 0.000000e+00 : f32
    %7 = vector.broadcast %cst_5 : f32 to vector<8x128xf32>
    %8 = arith.maximumf %6, %7 : vector<8x128xf32>
    %9 = arith.truncf %8 : vector<8x128xf32> to vector<8x128xbf16>
    %c0_6 = arith.constant 0 : index
    %c0_7 = arith.constant 0 : index
    %10 = vector.load %arg4[%c0_6, %c0_7] : memref<128x128xbf16, #tpu.memory_space<vmem>>, vector<128x128xbf16>
    %cst_8 = arith.constant dense<0.000000e+00> : vector<8x128xf32>
    %11 = tpu.matmul %9, %10, %cst_8 {dimension_numbers = #tpu.dot_dimension_numbers<[1], [0], [0], [1], [0, 0, 1, 1], [], []>} : vector<8x128xbf16>, vector<128x128xbf16>, vector<8x128xf32> -> vector<8x128xf32>
    %c0_9 = arith.constant 0 : index
    %c0_10 = arith.constant 0 : index
    %12 = vector.load %arg5[%c0_9, %c0_10] : memref<1x128xf32, #tpu.memory_space<vmem>>, vector<1x128xf32>
    %13 = vector.broadcast %12 : vector<1x128xf32> to vector<8x128xf32>
    %14 = arith.addf %11, %13 : vector<8x128xf32>
    %cst_11 = arith.constant 0.000000e+00 : f32
    %15 = vector.broadcast %cst_11 : f32 to vector<8x128xf32>
    %16 = arith.maximumf %14, %15 : vector<8x128xf32>
    %17 = arith.truncf %16 : vector<8x128xf32> to vector<8x128xbf16>
    %c0_12 = arith.constant 0 : index
    %c0_13 = arith.constant 0 : index
    %18 = vector.load %arg6[%c0_12, %c0_13] : memref<128x128xbf16, #tpu.memory_space<vmem>>, vector<128x128xbf16>
    %cst_14 = arith.constant dense<0.000000e+00> : vector<8x128xf32>
    %19 = tpu.matmul %17, %18, %cst_14 {dimension_numbers = #tpu.dot_dimension_numbers<[1], [0], [0], [1], [0, 0, 1, 1], [], []>} : vector<8x128xbf16>, vector<128x128xbf16>, vector<8x128xf32> -> vector<8x128xf32>
    %c0_15 = arith.constant 0 : index
    %c0_16 = arith.constant 0 : index
    %20 = vector.load %arg7[%c0_15, %c0_16] : memref<1x128xf32, #tpu.memory_space<vmem>>, vector<1x128xf32>
    %21 = vector.broadcast %20 : vector<1x128xf32> to vector<8x128xf32>
    %22 = arith.addf %19, %21 : vector<8x128xf32>
    %c0_17 = arith.constant 0 : index
    %c0_18 = arith.constant 0 : index
    %23 = vector.load %arg8[%c0_17, %c0_18] : memref<8x128xf32, #tpu.memory_space<vmem>>, vector<8x128xf32>
    tpu.vector_store %arg8[%c0_17, %c0_18], %22 {strides = array<i32>} : memref<8x128xf32, #tpu.memory_space<vmem>>, vector<8x128xf32>,
    return
  }
  func.func @transform_0(%arg0: i32) -> (i32, i32) {
    %c0_i32 = arith.constant 0 : i32
    %c0_i32_0 = arith.constant 0 : i32
    return %arg0, %c0_i32 : i32, i32
  }
  func.func @transform_1(%arg0: i32) -> (i32, i32) {
    %c0_i32 = arith.constant 0 : i32
    %c0_i32_0 = arith.constant 0 : i32
    %c0_i32_1 = arith.constant 0 : i32
    return %c0_i32, %c0_i32_0 : i32, i32
  }
  func.func @transform_2(%arg0: i32) -> (i32, i32) {
    %c0_i32 = arith.constant 0 : i32
    %c0_i32_0 = arith.constant 0 : i32
    %c0_i32_1 = arith.constant 0 : i32
    return %c0_i32, %c0_i32_0 : i32, i32
  }
  func.func @transform_3(%arg0: i32) -> (i32, i32) {
    %c0_i32 = arith.constant 0 : i32
    %c0_i32_0 = arith.constant 0 : i32
    %c0_i32_1 = arith.constant 0 : i32
    return %c0_i32, %c0_i32_0 : i32, i32
  }
  func.func @transform_4(%arg0: i32) -> (i32, i32) {
    %c0_i32 = arith.constant 0 : i32
    %c0_i32_0 = arith.constant 0 : i32
    %c0_i32_1 = arith.constant 0 : i32
    return %c0_i32, %c0_i32_0 : i32, i32
  }
  func.func @transform_5(%arg0: i32) -> (i32, i32) {
    %c0_i32 = arith.constant 0 : i32
    %c0_i32_0 = arith.constant 0 : i32
    %c0_i32_1 = arith.constant 0 : i32
    return %c0_i32, %c0_i32_0 : i32, i32
  }
  func.func @transform_6(%arg0: i32) -> (i32, i32) {
    %c0_i32 = arith.constant 0 : i32
    %c0_i32_0 = arith.constant 0 : i32
    %c0_i32_1 = arith.constant 0 : i32
    return %c0_i32, %c0_i32_0 : i32, i32
  }
  func.func @transform_7(%arg0: i32) -> (i32, i32) {
    %c0_i32 = arith.constant 0 : i32
    %c0_i32_0 = arith.constant 0 : i32
    return %arg0, %c0_i32 : i32, i32
  }
}

</mosaic_0001>

<llo_original>
// kernel: tpu_custom_call.1
$region0: #{tpu_custom_call.1}
  #allocation0 [shape = 'u32[]', space=smem, size = 0x4, offset = 0x4, fixed_abs, tag = 'smem constant byte address 0x4 - core index']
  #allocation1 [shape = 'u32[72,128]{1,0:T(1,128)}', space=vmem, size = 0x9000, scoped, tag = 'internal scratch']
  %s0 = inlined_call_operand.hbm [shape: f32[8,128], index: 0, kind: input, shape index: {}]
  %s1 = inlined_call_operand.hbm [shape: bf16[128,128], index: 1, kind: input, shape index: {}]
  %s2 = inlined_call_operand.vmem [shape: f32[1,128], index: 2, kind: input, shape index: {}]
  %s3 = inlined_call_operand.hbm [shape: bf16[128,128], index: 3, kind: input, shape index: {}]
  %s4 = inlined_call_operand.vmem [shape: f32[1,128], index: 4, kind: input, shape index: {}]
  %s5 = inlined_call_operand.hbm [shape: bf16[128,128], index: 5, kind: input, shape index: {}]
  %s6 = inlined_call_operand.vmem [shape: f32[1,128], index: 6, kind: input, shape index: {}]
  %s7 = inlined_call_operand.hbm [shape: f32[8,128], index: 7, kind: output, shape index: {}]
  %s8 = sld [smem:[#allocation0]]
  $region54: #{tpu_custom_call.1} parent=0
    _
  %s10 = ssub.s32 1, %s8
  %s11 = scalar_select 0, %s10, %s8
  $region1: #{tpu_custom_call.1} parent=0
    #allocation2 [shape = 'u8[4096]{0}', space=vmem, size = 0x1000, scoped, tag = 'input window, operand 0, single buffered']
    #allocation3 [shape = 's32[1]{0}', space=sflag, size = 0x4, scoped, tag = 'scoped memory for tpu_custom_call.1']
    #allocation4 [shape = 's32[1]{0}', space=sflag, size = 0x4, scoped, tag = 'scoped memory for tpu_custom_call.1']
    #allocation5 [shape = 'u8[32768]{0}', space=vmem, size = 0x8000, scoped, tag = 'input window, operand 1, single buffered']
    #allocation6 [shape = 's32[1]{0}', space=sflag, size = 0x4, scoped, tag = 'scoped memory for tpu_custom_call.1']
    #allocation7 [shape = 'u8[32768]{0}', space=vmem, size = 0x8000, scoped, tag = 'input window, operand 3, single buffered']
    #allocation8 [shape = 'u8[32768]{0}', space=vmem, size = 0x8000, scoped, tag = 'input window, operand 5, single buffered']
    #allocation9 [shape = 's32[1]{0}', space=sflag, size = 0x4, scoped, tag = 'scoped memory for tpu_custom_call.1']
    #allocation10 [shape = 'u8[4096]{0}', space=vmem, size = 0x1000, scoped, tag = 'output window, operand 0, single buffered']
    %12 = vsyncpa [#allocation3], 0
    %13 = vsyncpa [#allocation6], 0
    %14 = vsyncpa [#allocation9], 0
    %15 = vsyncpa [#allocation4], 0
    // Predicated region
    $region2: #{tpu_custom_call.1} parent=1 // pred_check
      _
    $region3: #{tpu_custom_call.1} parent=1 // pred_check_branch
      %17 = sbr.rel (0) target = $region5
    $region4: #{tpu_custom_call.1} parent=1 // pred_region
      %19 = vsyncadd [#allocation3], 0
      %s21 = sshll.u32 %s0, 4
      %s22 = int_to_ptr.hbm [resolvable:$true] %s21
      %s23 = sshll.u32 [#allocation2], 4
      %s24 = int_to_ptr.vmem [resolvable:$true] %s23
      %26 = dma.hbm_to_vmem [thread:$0]  %s22, 128, %s24, [#allocation3]
    $region5: #{tpu_custom_call.1} parent=1 // pred_fallthru
      _
    // Predicated region
    $region6: #{tpu_custom_call.1} parent=1 // pred_check
      _
    $region7: #{tpu_custom_call.1} parent=1 // pred_check_branch
      %28 = sbr.rel (0) target = $region9
    $region8: #{tpu_custom_call.1} parent=1 // pred_region
      %30 = vsyncadd [#allocation6], 0
      %s31 = sshll.u32 %s1, 4
      %s32 = int_to_ptr.hbm [resolvable:$true] %s31
      %s33 = sshll.u32 [#allocation5], 4
      %s34 = int_to_ptr.vmem [resolvable:$true] %s33
      %39 = dma.hbm_to_vmem [thread:$0]  %s32, 1024, %s34, [#allocation6], 64, 64, 4
    $region9: #{tpu_custom_call.1} parent=1 // pred_fallthru
      _
    // Predicated region
    $region10: #{tpu_custom_call.1} parent=1 // pred_check
      _
    $region11: #{tpu_custom_call.1} parent=1 // pred_check_branch
      %41 = sbr.rel (0) target = $region13
    $region12: #{tpu_custom_call.1} parent=1 // pred_region
      _
    $region13: #{tpu_custom_call.1} parent=1 // pred_fallthru
      _
    // Predicated region
    $region14: #{tpu_custom_call.1} parent=1 // pred_check
      _
    $region15: #{tpu_custom_call.1} parent=1 // pred_check_branch
      %43 = sbr.rel (0) target = $region17
    $region16: #{tpu_custom_call.1} parent=1 // pred_region
      %45 = vsyncadd [#allocation6], 0
      %s46 = sshll.u32 %s3, 4
      %s47 = int_to_ptr.hbm [resolvable:$true] %s46
      %s48 = sshll.u32 [#allocation7], 4
      %s49 = int_to_ptr.vmem [resolvable:$true] %s48
      %54 = dma.hbm_to_vmem [thread:$0]  %s47, 1024, %s49, [#allocation6], 64, 64, 4
    $region17: #{tpu_custom_call.1} parent=1 // pred_fallthru
      _
    // Predicated region
    $region18: #{tpu_custom_call.1} parent=1 // pred_check
      _
    $region19: #{tpu_custom_call.1} parent=1 // pred_check_branch
      %56 = sbr.rel (0) target = $region21
    $region20: #{tpu_custom_call.1} parent=1 // pred_region
      _
    $region21: #{tpu_custom_call.1} parent=1 // pred_fallthru
      _
    // Predicated region
    $region22: #{tpu_custom_call.1} parent=1 // pred_check
      _
    $region23: #{tpu_custom_call.1} parent=1 // pred_check_branch
      %58 = sbr.rel (0) target = $region25
    $region24: #{tpu_custom_call.1} parent=1 // pred_region
      %60 = vsyncadd [#allocation9], 0
      %s61 = sshll.u32 %s5, 4
      %s62 = int_to_ptr.hbm [resolvable:$true] %s61
      %s63 = sshll.u32 [#allocation8], 4
      %s64 = int_to_ptr.vmem [resolvable:$true] %s63
      %69 = dma.hbm_to_vmem [thread:$0]  %s62, 1024, %s64, [#allocation9], 64, 64, 4
    $region25: #{tpu_custom_call.1} parent=1 // pred_fallthru
      _
    // Predicated region
    $region26: #{tpu_custom_call.1} parent=1 // pred_check
      _
    $region27: #{tpu_custom_call.1} parent=1 // pred_check_branch
      %71 = sbr.rel (0) target = $region29
    $region28: #{tpu_custom_call.1} parent=1 // pred_region
      _
    $region29: #{tpu_custom_call.1} parent=1 // pred_fallthru
      _
    // Predicated region
    $region30: #{tpu_custom_call.1} parent=1 // pred_check
      _
    $region31: #{tpu_custom_call.1} parent=1 // pred_check_branch
      %73 = sbr.rel (0) target = $region33
    $region32: #{tpu_custom_call.1} parent=1 // pred_region
      %75 = dma.done [#allocation3], 128
    $region33: #{tpu_custom_call.1} parent=1 // pred_fallthru
      _
    // Predicated region
    $region34: #{tpu_custom_call.1} parent=1 // pred_check
      _
    $region35: #{tpu_custom_call.1} parent=1 // pred_check_branch
      %77 = sbr.rel (0) target = $region37
    $region36: #{tpu_custom_call.1} parent=1 // pred_region
      %79 = dma.done [#allocation6], 1024
    $region37: #{tpu_custom_call.1} parent=1 // pred_fallthru
      _
    // Predicated region
    $region38: #{tpu_custom_call.1} parent=1 // pred_check
      _
    $region39: #{tpu_custom_call.1} parent=1 // pred_check_branch
      %81 = sbr.rel (0) target = $region41
    $region40: #{tpu_custom_call.1} parent=1 // pred_region
      %83 = dma.done [#allocation6], 1024
    $region41: #{tpu_custom_call.1} parent=1 // pred_fallthru
      _
    // Predicated region
    $region42: #{tpu_custom_call.1} parent=1 // pred_check
      _
    $region43: #{tpu_custom_call.1} parent=1 // pred_check_branch
      %85 = sbr.rel (0) target = $region45
    $region44: #{tpu_custom_call.1} parent=1 // pred_region
      %87 = dma.done [#allocation9], 1024
    $region45: #{tpu_custom_call.1} parent=1 // pred_fallthru
      _
    %v88 = vld [vmem:[#allocation2] sm:$0xff]
    %v89 = vpack.c.bf16 %v88, %v88
    %v90 = vld [vmem:[#allocation5] sm:$0xf]
    %v91 = vld [vmem:[#allocation5 + $0x4] sm:$0xf]
    %v92 = vld [vmem:[#allocation5 + $0x8] sm:$0xf]
    %v93 = vld [vmem:[#allocation5 + $0xc] sm:$0xf]
    %v94 = vld [vmem:[#allocation5 + $0x10] sm:$0xf]
    %v95 = vld [vmem:[#allocation5 + $0x14] sm:$0xf]
    %v96 = vld [vmem:[#allocation5 + $0x18] sm:$0xf]
    %v97 = vld [vmem:[#allocation5 + $0x1c] sm:$0xf]
    %v98 = vld [vmem:[#allocation5 + $0x20] sm:$0xf]
    %v99 = vld [vmem:[#allocation5 + $0x24] sm:$0xf]
    %v100 = vld [vmem:[#allocation5 + $0x28] sm:$0xf]
    %v101 = vld [vmem:[#allocation5 + $0x2c] sm:$0xf]
    %v102 = vld [vmem:[#allocation5 + $0x30] sm:$0xf]
    %v103 = vld [vmem:[#allocation5 + $0x34] sm:$0xf]
    %v104 = vld [vmem:[#allocation5 + $0x38] sm:$0xf]
    %v105 = vld [vmem:[#allocation5 + $0x3c] sm:$0xf]
    %v106 = vld [vmem:[%s2] sm:$0x1]
    %v108 = vperm.slane %v106, 0
    %v126 = vunpack.c.l.b16 %v90
    %v127 = vunpack.c.l.b16 %v91
    %v128 = vunpack.c.l.b16 %v92
    %v129 = vunpack.c.l.b16 %v93
    %v130 = vunpack.c.l.b16 %v94
    %v131 = vunpack.c.l.b16 %v95
    %v132 = vunpack.c.l.b16 %v96
    %v133 = vunpack.c.l.b16 %v97
    %v134 = vunpack.c.l.b16 %v98
    %v135 = vunpack.c.l.b16 %v99
    %v136 = vunpack.c.l.b16 %v100
    %v137 = vunpack.c.l.b16 %v101
    %v138 = vunpack.c.l.b16 %v102
    %v139 = vunpack.c.l.b16 %v103
    %v140 = vunpack.c.l.b16 %v104
    %v141 = vunpack.c.l.b16 %v105
    %v142 = vpack.c.b16 %v127, %v126
    %v143 = vpack.c.b16 %v129, %v128
    %v144 = vpack.c.b16 %v131, %v130
    %v145 = vpack.c.b16 %v133, %v132
    %v146 = vpack.c.b16 %v135, %v134
    %v147 = vpack.c.b16 %v137, %v136
    %v148 = vpack.c.b16 %v139, %v138
    %v149 = vpack.c.b16 %v141, %v140
    %158 = vmatpush.bf16.msra.mxu0 %v149
    %159 = vmatpush.bf16.msra.mxu0 %v148
    %160 = vmatpush.bf16.msra.mxu0 %v147
    %161 = vmatpush.bf16.msra.mxu0 %v146
    %162 = vmatpush.bf16.msra.mxu0 %v145
    %163 = vmatpush.bf16.msra.mxu0 %v144
    %164 = vmatpush.bf16.msra.mxu0 %v143
    %165 = vmatpush.bf16.msra.mxu0 %v142
    %166 = vmatmul.bf16.gmra.mxu0 %v89
    %v167 = vpop.f32.mrf.mxu0
    %v168 = vadd.f32 %v108, %v167
    %v169 = vpop.f32.mrf.mxu0
    %170 = vdwg.mxu0
    %v171 = vmax.f32 %v168, 0.0
    %v172 = vpack.c.bf16 %v171, %v171
    %v173 = vld [vmem:[#allocation7] sm:$0xf]
    %v174 = vld [vmem:[#allocation7 + $0x4] sm:$0xf]
    %v175 = vld [vmem:[#allocation7 + $0x8] sm:$0xf]
    %v176 = vld [vmem:[#allocation7 + $0xc] sm:$0xf]
    %v177 = vld [vmem:[#allocation7 + $0x10] sm:$0xf]
    %v178 = vld [vmem:[#allocation7 + $0x14] sm:$0xf]
    %v179 = vld [vmem:[#allocation7 + $0x18] sm:$0xf]
    %v180 = vld [vmem:[#allocation7 + $0x1c] sm:$0xf]
    %v181 = vld [vmem:[#allocation7 + $0x20] sm:$0xf]
    %v182 = vld [vmem:[#allocation7 + $0x24] sm:$0xf]
    %v183 = vld [vmem:[#allocation7 + $0x28] sm:$0xf]
    %v184 = vld [vmem:[#allocation7 + $0x2c] sm:$0xf]
    %v185 = vld [vmem:[#allocation7 + $0x30] sm:$0xf]
    %v186 = vld [vmem:[#allocation7 + $0x34] sm:$0xf]
    %v187 = vld [vmem:[#allocation7 + $0x38] sm:$0xf]
    %v188 = vld [vmem:[#allocation7 + $0x3c] sm:$0xf]
    %v189 = vld [vmem:[%s4] sm:$0x1]
    %v191 = vperm.slane %v189, 0
    %v209 = vunpack.c.l.b16 %v173
    %v210 = vunpack.c.l.b16 %v174
    %v211 = vunpack.c.l.b16 %v175
    %v212 = vunpack.c.l.b16 %v176
    %v213 = vunpack.c.l.b16 %v177
    %v214 = vunpack.c.l.b16 %v178
    %v215 = vunpack.c.l.b16 %v179
    %v216 = vunpack.c.l.b16 %v180
    %v217 = vunpack.c.l.b16 %v181
    %v218 = vunpack.c.l.b16 %v182
    %v219 = vunpack.c.l.b16 %v183
    %v220 = vunpack.c.l.b16 %v184
    %v221 = vunpack.c.l.b16 %v185
    %v222 = vunpack.c.l.b16 %v186
    %v223 = vunpack.c.l.b16 %v187
    %v224 = vunpack.c.l.b16 %v188
    %v225 = vpack.c.b16 %v210, %v209
    %v226 = vpack.c.b16 %v212, %v211
    %v227 = vpack.c.b16 %v214, %v213
    %v228 = vpack.c.b16 %v216, %v215
    %v229 = vpack.c.b16 %v218, %v217
    %v230 = vpack.c.b16 %v220, %v219
    %v231 = vpack.c.b16 %v222, %v221
    %v232 = vpack.c.b16 %v224, %v223
    %241 = vmatpush.bf16.msra.mxu0 %v232
    %242 = vmatpush.bf16.msra.mxu0 %v231
    %243 = vmatpush.bf16.msra.mxu0 %v230
    %244 = vmatpush.bf16.msra.mxu0 %v229
    %245 = vmatpush.bf16.msra.mxu0 %v228
    %246 = vmatpush.bf16.msra.mxu0 %v227
    %247 = vmatpush.bf16.msra.mxu0 %v226
    %248 = vmatpush.bf16.msra.mxu0 %v225
    %249 = vmatmul.bf16.gmra.mxu0 %v172
    %v250 = vpop.f32.mrf.mxu0
    %v251 = vadd.f32 %v191, %v250
    %v252 = vpop.f32.mrf.mxu0
    %253 = vdwg.mxu0
    %v254 = vmax.f32 %v251, 0.0
    %v255 = vpack.c.bf16 %v254, %v254
    %v256 = vld [vmem:[#allocation8] sm:$0xf]
    %v257 = vld [vmem:[#allocation8 + $0x4] sm:$0xf]
    %v258 = vld [vmem:[#allocation8 + $0x8] sm:$0xf]
    %v259 = vld [vmem:[#allocation8 + $0xc] sm:$0xf]
    %v260 = vld [vmem:[#allocation8 + $0x10] sm:$0xf]
    %v261 = vld [vmem:[#allocation8 + $0x14] sm:$0xf]
    %v262 = vld [vmem:[#allocation8 + $0x18] sm:$0xf]
    %v263 = vld [vmem:[#allocation8 + $0x1c] sm:$0xf]
    %v264 = vld [vmem:[#allocation8 + $0x20] sm:$0xf]
    %v265 = vld [vmem:[#allocation8 + $0x24] sm:$0xf]
    %v266 = vld [vmem:[#allocation8 + $0x28] sm:$0xf]
    %v267 = vld [vmem:[#allocation8 + $0x2c] sm:$0xf]
    %v268 = vld [vmem:[#allocation8 + $0x30] sm:$0xf]
    %v269 = vld [vmem:[#allocation8 + $0x34] sm:$0xf]
    %v270 = vld [vmem:[#allocation8 + $0x38] sm:$0xf]
    %v271 = vld [vmem:[#allocation8 + $0x3c] sm:$0xf]
    %v272 = vld [vmem:[%s6] sm:$0x1]
    %v274 = vperm.slane %v272, 0
    %v292 = vunpack.c.l.b16 %v256
    %v293 = vunpack.c.l.b16 %v257
    %v294 = vunpack.c.l.b16 %v258
    %v295 = vunpack.c.l.b16 %v259
    %v296 = vunpack.c.l.b16 %v260
    %v297 = vunpack.c.l.b16 %v261
    %v298 = vunpack.c.l.b16 %v262
    %v299 = vunpack.c.l.b16 %v263
    %v300 = vunpack.c.l.b16 %v264
    %v301 = vunpack.c.l.b16 %v265
    %v302 = vunpack.c.l.b16 %v266
    %v303 = vunpack.c.l.b16 %v267
    %v304 = vunpack.c.l.b16 %v268
    %v305 = vunpack.c.l.b16 %v269
    %v306 = vunpack.c.l.b16 %v270
    %v307 = vunpack.c.l.b16 %v271
    %v308 = vpack.c.b16 %v293, %v292
    %v309 = vpack.c.b16 %v295, %v294
    %v310 = vpack.c.b16 %v297, %v296
    %v311 = vpack.c.b16 %v299, %v298
    %v312 = vpack.c.b16 %v301, %v300
    %v313 = vpack.c.b16 %v303, %v302
    %v314 = vpack.c.b16 %v305, %v304
    %v315 = vpack.c.b16 %v307, %v306
    %324 = vmatpush.bf16.msra.mxu0 %v315
    %325 = vmatpush.bf16.msra.mxu0 %v314
    %326 = vmatpush.bf16.msra.mxu0 %v313
    %327 = vmatpush.bf16.msra.mxu0 %v312
    %328 = vmatpush.bf16.msra.mxu0 %v311
    %329 = vmatpush.bf16.msra.mxu0 %v310
    %330 = vmatpush.bf16.msra.mxu0 %v309
    %331 = vmatpush.bf16.msra.mxu0 %v308
    %332 = vmatmul.bf16.gmra.mxu0 %v255
    %v333 = vpop.f32.mrf.mxu0
    %v334 = vadd.f32 %v274, %v333
    %v335 = vpop.f32.mrf.mxu0
    %336 = vdwg.mxu0
    %337 = vst [vmem:[#allocation10] sm:$0xff] %v334
    // Predicated region
    $region46: #{tpu_custom_call.1} parent=1 // pred_check
      _
    $region47: #{tpu_custom_call.1} parent=1 // pred_check_branch
      %339 = sbr.rel (0) target = $region49
    $region48: #{tpu_custom_call.1} parent=1 // pred_region
      %341 = vsyncadd [#allocation4], 0
      %s343 = sshll.u32 [#allocation10], 4
      %s344 = int_to_ptr.vmem [resolvable:$true] %s343
      %s345 = sshll.u32 %s7, 4
      %s346 = int_to_ptr.hbm [resolvable:$true] %s345
      %348 = dma.vmem_to_hbm [thread:$0]  %s344, 128, %s346, [#allocation4]
    $region49: #{tpu_custom_call.1} parent=1 // pred_fallthru
      _
    // Predicated region
    $region50: #{tpu_custom_call.1} parent=1 // pred_check
      _
    $region51: #{tpu_custom_call.1} parent=1 // pred_check_branch
      %350 = sbr.rel (0) target = $region53
    $region52: #{tpu_custom_call.1} parent=1 // pred_region
      %352 = dma.done [#allocation4], 128
    $region53: #{tpu_custom_call.1} parent=1 // pred_fallthru
      _
    %353 = vsyncpa [#allocation3], 1
    %354 = vsyncpa [#allocation6], 1
    %355 = vsyncpa [#allocation9], 1
    %356 = vsyncpa [#allocation4], 1

</llo_original>
